<compile_context>
chip_gen: v7x
topology: tpu7x:2x2x1
jax: 0.10.0
libtpu: 0.0.40
codegen_flags: <defaults>
</compile_context>

<pallas_src>
import functools

import jax
import jax.numpy as jnp
from jax.experimental import pallas as pl
from jax.experimental.pallas import tpu as pltpu


def _input_conv_skip_kernel(x_ref, sc_ref, w_ref, p_ref, o_ref):
    # x_ref : (tN, C_in, tL)   NCL tile(s), native dtype
    # sc_ref: (tN, C_out, tL)  skip-connection tile(s), native dtype
    # w_ref : (C_out, C_in)    1x1-conv weight (x dtype; f32 accumulation below)
    # p_ref : (1, C_out, 4)    folded f32 per-channel constants [b, A, B, s2]
    # out   = A * relu(W x + b) + s2 * sc + B
    tn = x_ref.shape[0]
    c_out, c_in = w_ref.shape
    w = jnp.broadcast_to(w_ref[...], (tn, c_out, c_in))
    y = jnp.einsum("noc,ncl->nol", w, x_ref[...],
                   preferred_element_type=jnp.float32)
    p = p_ref[...]
    y = jnp.maximum(y + p[:, :, 0:1], 0.0)                       # conv bias + ReLU
    y = y * p[:, :, 1:2] + (sc_ref[...].astype(jnp.float32) * p[:, :, 3:4]
                            + p[:, :, 2:3])
    o_ref[...] = y.astype(o_ref.dtype)


def _input_conv_noskip_kernel(x_ref, w_ref, p_ref, o_ref):
    # out = A * relu(W x + b) + B   (no sc stream DMA'd at all)
    tn = x_ref.shape[0]
    c_out, c_in = w_ref.shape
    w = jnp.broadcast_to(w_ref[...], (tn, c_out, c_in))
    y = jnp.einsum("noc,ncl->nol", w, x_ref[...],
                   preferred_element_type=jnp.float32)
    p = p_ref[...]
    y = jnp.maximum(y + p[:, :, 0:1], 0.0)
    o_ref[...] = (y * p[:, :, 1:2] + p[:, :, 2:3]).astype(o_ref.dtype)


@functools.partial(jax.jit,
                   static_argnames=("skip", "tn", "tl", "out_dtype", "donate_sc"))
def input_conv_forward(x, sc, params, skip=True, tn=None, tl=None,
                       out_dtype=None, donate_sc=False):
    """x: (N, C_in, L), sc: (N, C_out, L)  ->  (N, C_out, L), NCL like PyTorch.

    tn: batch elements per grid step (small-L path).   tl: L-tile (large-L path).
    Pass at most one of them; both default to a bytes-per-step heuristic.
    out_dtype defaults to x.dtype.  donate_sc=True aliases sc's buffer to the
    output on the skip path (use only when sc is dead after this op).
    """
    N, C_in, L = x.shape
    C_out = params["w"].shape[0]
    eps = 1e-3  # module explicitly sets BatchNorm1d(..., eps=0.001)
    f32 = jnp.float32
    out_dtype = jnp.dtype(x.dtype if out_dtype is None else out_dtype)

    # Fold BN (eval mode) into per-channel scale/shift, then fold bn2 o bn1.
    s1 = params["bn1_gamma"].astype(f32) * jax.lax.rsqrt(params["bn1_var"].astype(f32) + eps)
    t1 = params["bn1_beta"].astype(f32) - params["bn1_mean"].astype(f32) * s1
    s2 = params["bn2_gamma"].astype(f32) * jax.lax.rsqrt(params["bn2_var"].astype(f32) + eps)
    t2 = params["bn2_beta"].astype(f32) - params["bn2_mean"].astype(f32) * s2
    A = s1 * s2
    B = s2 * t1 + t2

    # Single tiny constant block: (1, C_out, 4) = [b, A, B, s2], kept in f32.
    pvec = jnp.stack([params["b"].astype(f32), A, B, s2], axis=1)[None]
    # Weight in the activation dtype (bf16 MXU-native when x is bf16).
    w = params["w"].reshape(C_out, C_in).astype(x.dtype)

    # ---- tile selection: target ~4 MB of streamed bytes per grid step --------
    # (>= ~5x the ~0.35 us per-step overhead at v5e..v7x HBM bandwidth).
    x_b = jnp.dtype(x.dtype).itemsize
    sc_b = jnp.dtype(sc.dtype).itemsize if skip else 0
    o_b = out_dtype.itemsize
    bytes_per_token = C_in * x_b + C_out * (o_b + sc_b)
    TARGET = 4 << 20

    if tn is not None and tl is not None:
        raise ValueError("pass at most one of tn / tl")
    # Small/medium L: block multiple batch elements per step (full L per block).
    batched = tl is None and (tn is not None or L <= 4096)

    if batched:
        if tn is None:
            # Clamp at 256 to bound the per-step batched-matmul unroll.
            tn = int(max(1, min(N, TARGET // max(1, bytes_per_token * L), 256)))
        grid = (pl.cdiv(N, tn),)                       # leading batch axis, parallel
        x_spec = pl.BlockSpec((tn, C_in, L), lambda n: (n, 0, 0))
        sc_spec = pl.BlockSpec((tn, C_out, L), lambda n: (n, 0, 0))
        o_spec = pl.BlockSpec((tn, C_out, L), lambda n: (n, 0, 0))
        w_spec = pl.BlockSpec((C_out, C_in), lambda n: (0, 0))
        p_spec = pl.BlockSpec((1, C_out, 4), lambda n: (0, 0, 0))
        sem = ("parallel",)
        tokens_per_step = tn * L
        w_copies = tn + 2
    else:
        if tl is None:
            want = max(128, (TARGET // max(1, bytes_per_token)) // 128 * 128)
            tl = int(max(128, min((L // 128) * 128, want, 8192)))
        tn = 1
        grid = (N, pl.cdiv(L, tl))
        x_spec = pl.BlockSpec((1, C_in, tl), lambda n, l: (n, 0, l))
        sc_spec = pl.BlockSpec((1, C_out, tl), lambda n, l: (n, 0, l))
        o_spec = pl.BlockSpec((1, C_out, tl), lambda n, l: (n, 0, l))
        w_spec = pl.BlockSpec((C_out, C_in), lambda n, l: (0, 0))
        p_spec = pl.BlockSpec((1, C_out, 4), lambda n, l: (0, 0, 0))
        sem = ("parallel", "parallel")
        tokens_per_step = tl
        w_copies = 3

    # ---- explicit VMEM budget (v5e default limit is 16 MiB; v7x physical 64) --
    step_stream = tokens_per_step * bytes_per_token
    vmem_need = (2 * step_stream                          # double-buffered streams
                 + 3 * tokens_per_step * C_out * 4        # f32 dot result + epilogue temps
                 + w_copies * C_out * C_in * x_b          # weight (+ in-kernel broadcast)
                 + (2 << 20))                             # headroom (pvec, pipeline state)
    vmem_limit = int(min(max(vmem_need, 32 << 20), 64 << 20))
    cparams = pltpu.CompilerParams(dimension_semantics=sem,
                                   vmem_limit_bytes=vmem_limit)

    out_shape = jax.ShapeDtypeStruct((N, C_out, L), out_dtype)

    if skip:
        io_alias = {}
        if donate_sc and sc.shape == (N, C_out, L) and jnp.dtype(sc.dtype) == out_dtype:
            io_alias = {1: 0}   # reuse sc's HBM buffer for the output
        return pl.pallas_call(
            _input_conv_skip_kernel,
            out_shape=out_shape,
            grid_spec=pltpu.PrefetchScalarGridSpec(
                num_scalar_prefetch=0,
                grid=grid,
                in_specs=[x_spec, sc_spec, w_spec, p_spec],
                out_specs=o_spec),
            input_output_aliases=io_alias,
            compiler_params=cparams,
        )(x, sc, w, pvec)
    else:
        return pl.pallas_call(
            _input_conv_noskip_kernel,
            out_shape=out_shape,
            grid_spec=pltpu.PrefetchScalarGridSpec(
                num_scalar_prefetch=0,
                grid=grid,
                in_specs=[x_spec, w_spec, p_spec],
                out_specs=o_spec),
            compiler_params=cparams,
        )(x, w, pvec)


def _reference_forward(x, sc, params, skip=True):
    """Pure-JAX reference mirroring the PyTorch eval forward (f32)."""
    eps = 1e-3
    x = x.astype(jnp.float32)
    sc = sc.astype(jnp.float32)
    w = params["w"].reshape(params["w"].shape[0], -1)        # (C_out, C_in)
    y = jnp.einsum("oc,ncl->nol", w, x) + params["b"][None, :, None]
    y = jnp.maximum(y, 0.0)
    y = (y - params["bn1_mean"][None, :, None]) / jnp.sqrt(
        params["bn1_var"][None, :, None] + eps)
    y = y * params["bn1_gamma"][None, :, None] + params["bn1_beta"][None, :, None]
    if skip:
        y = sc + y
    y = (y - params["bn2_mean"][None, :, None]) / jnp.sqrt(
        params["bn2_var"][None, :, None] + eps)
    y = y * params["bn2_gamma"][None, :, None] + params["bn2_beta"][None, :, None]
    return y


def make_params(key, in_chn, out_chn):
    """Deterministic synthetic parameters (shapes match the PyTorch __init__)."""
    ks = jax.random.split(key, 10)
    return {
        "w": jax.random.normal(ks[0], (out_chn, in_chn, 1), jnp.float32) * 0.2,
        "b": jax.random.normal(ks[1], (out_chn,), jnp.float32) * 0.05,
        "bn1_gamma": 1.0 + 0.1 * jax.random.normal(ks[2], (out_chn,), jnp.float32),
        "bn1_beta": 0.1 * jax.random.normal(ks[3], (out_chn,), jnp.float32),
        "bn1_mean": 0.1 * jax.random.normal(ks[4], (out_chn,), jnp.float32),
        "bn1_var": 1.0 + 0.1 * jax.random.uniform(ks[5], (out_chn,), jnp.float32),
        "bn2_gamma": 1.0 + 0.1 * jax.random.normal(ks[6], (out_chn,), jnp.float32),
        "bn2_beta": 0.1 * jax.random.normal(ks[7], (out_chn,), jnp.float32),
        "bn2_mean": 0.1 * jax.random.normal(ks[8], (out_chn,), jnp.float32),
        "bn2_var": 1.0 + 0.1 * jax.random.uniform(ks[9], (out_chn,), jnp.float32),
    }


if __name__ == "__main__":
    key = jax.random.PRNGKey(0)
    k_x, k_sc, k_p = jax.random.split(key, 3)

    N, C_in, C_out, L = 2, 4, 32, 16          # x: (N, C_in, L) NCL, like PyTorch
    x = jax.random.normal(k_x, (N, C_in, L), jnp.float32)
    sc = jax.random.normal(k_sc, (N, C_out, L), jnp.float32)
    params = make_params(k_p, C_in, C_out)

    # skip=True path (small-L batched path, f32 in/out).
    out = jax.block_until_ready(input_conv_forward(x, sc, params, skip=True))
    ref = _reference_forward(x, sc, params, skip=True)
    assert out.shape == (N, C_out, L) and out.dtype == x.dtype
    assert jnp.allclose(out, ref, atol=5e-4, rtol=5e-4), \
        f"max abs err {float(jnp.max(jnp.abs(out - ref)))}"

    # skip=False path (specialized kernel, no sc stream).
    out2 = jax.block_until_ready(input_conv_forward(x, sc, params, skip=False))
    ref2 = _reference_forward(x, sc, params, skip=False)
    assert jnp.allclose(out2, ref2, atol=5e-4, rtol=5e-4), \
        f"max abs err {float(jnp.max(jnp.abs(out2 - ref2)))}"

    # Ragged batch blocking (DeepJet small-L regime): N not a multiple of tn.
    N2, L2 = 19, 24
    x2 = jax.random.normal(k_x, (N2, C_in, L2), jnp.float32)
    sc2 = jax.random.normal(k_sc, (N2, C_out, L2), jnp.float32)
    out3 = jax.block_until_ready(input_conv_forward(x2, sc2, params, skip=True, tn=8))
    ref3 = _reference_forward(x2, sc2, params, skip=True)
    assert jnp.allclose(out3, ref3, atol=5e-4, rtol=5e-4), \
        f"max abs err {float(jnp.max(jnp.abs(out3 - ref3)))}"

    # Large-L lane-tiled path with a ragged L tail (masked tail lanes on store).
    L3 = 4500
    x3 = jax.random.normal(k_x, (N, C_in, L3), jnp.float32)
    sc3 = jax.random.normal(k_sc, (N, C_out, L3), jnp.float32)
    out4 = jax.block_until_ready(input_conv_forward(x3, sc3, params, skip=True))
    ref4 = _reference_forward(x3, sc3, params, skip=True)
    assert jnp.allclose(out4, ref4, atol=5e-4, rtol=5e-4), \
        f"max abs err {float(jnp.max(jnp.abs(out4 - ref4)))}"

    # bf16 in/out (native-dtype path; f32 accumulation, deliberately loose tol).
    xb = x.astype(jnp.bfloat16)
    scb = sc.astype(jnp.bfloat16)
    outb = jax.block_until_ready(input_conv_forward(xb, scb, params, skip=True))
    assert outb.dtype == jnp.bfloat16
    assert jnp.allclose(outb.astype(jnp.float32), ref, atol=5e-2, rtol=5e-2), \
        f"max abs err {float(jnp.max(jnp.abs(outb.astype(jnp.float32) - ref)))}"

    print("KERNEL_OK")
</pallas_src>

<mosaic_0001>
module attributes {stable_mosaic.version = 11 : i64} {
  func.func @_input_conv_skip_kernel(%arg0: i32, %arg1: memref<2x4x16xf32, #tpu.memory_space<vmem>>, %arg2: memref<2x32x16xf32, #tpu.memory_space<vmem>>, %arg3: memref<32x4xf32, #tpu.memory_space<vmem>>, %arg4: memref<1x32x4xf32, #tpu.memory_space<vmem>>, %arg5: memref<2x32x16xf32, #tpu.memory_space<vmem>>) attributes {dimension_semantics = [#tpu.dimension_semantics<parallel>], iteration_bounds = array<i64: 1>, scalar_prefetch = 0 : i64, scratch_operands = 0 : i64, tpu.core_type = #tpu.core_type<tc>, window_params = [{transform_indices = @transform_0, window_bounds = array<i64: 2, 4, 16>}, {transform_indices = @transform_1, window_bounds = array<i64: 2, 32, 16>}, {pipeline_mode = #tpu.pipeline_mode<synchronous>, transform_indices = @transform_2, window_bounds = array<i64: 32, 4>}, {pipeline_mode = #tpu.pipeline_mode<synchronous>, transform_indices = @transform_3, window_bounds = array<i64: 1, 32, 4>}, {transform_indices = @transform_4, window_bounds = array<i64: 2, 32, 16>}]} {
    %c0 = arith.constant 0 : index
    %c0_0 = arith.constant 0 : index
    %0 = vector.load %arg3[%c0, %c0_0] : memref<32x4xf32, #tpu.memory_space<vmem>>, vector<32x4xf32>
    %1 = vector.shape_cast %0 : vector<32x4xf32> to vector<1x32x4xf32>
    %2 = vector.broadcast %1 : vector<1x32x4xf32> to vector<2x32x4xf32>
    %c0_1 = arith.constant 0 : index
    %c0_2 = arith.constant 0 : index
    %c0_3 = arith.constant 0 : index
    %3 = vector.load %arg1[%c0_1, %c0_2, %c0_3] : memref<2x4x16xf32, #tpu.memory_space<vmem>>, vector<2x4x16xf32>
    "tpu.trace_start"() <{level = 10 : i32, message = "noc,ncl->nol"}> : () -> ()
    %cst = arith.constant dense<0.000000e+00> : vector<2x32x16xf32>
    %4 = tpu.matmul %2, %3, %cst {dimension_numbers = #tpu.dot_dimension_numbers<[2], [1], [1], [2], [0, 0, 0, 1, 1, 2], [0], [0]>} : vector<2x32x4xf32>, vector<2x4x16xf32>, vector<2x32x16xf32> -> vector<2x32x16xf32>
    "tpu.trace_stop"() : () -> ()
    %c0_4 = arith.constant 0 : index
    %c0_5 = arith.constant 0 : index
    %c0_6 = arith.constant 0 : index
    %5 = vector.load %arg4[%c0_4, %c0_5, %c0_6] : memref<1x32x4xf32, #tpu.memory_space<vmem>>, vector<1x32x4xf32>
    %6 = vector.extract_strided_slice %5 {offsets = [0, 0, 0], sizes = [1, 32, 1], strides = [1, 1, 1]} : vector<1x32x4xf32> to vector<1x32x1xf32>
    %7 = vector.broadcast %6 : vector<1x32x1xf32> to vector<2x32x16xf32>
    %8 = arith.addf %4, %7 : vector<2x32x16xf32>
    %cst_7 = arith.constant 0.000000e+00 : f32
    %9 = vector.broadcast %cst_7 : f32 to vector<2x32x16xf32>
    %10 = arith.maximumf %8, %9 : vector<2x32x16xf32>
    %11 = vector.extract_strided_slice %5 {offsets = [0, 0, 1], sizes = [1, 32, 1], strides = [1, 1, 1]} : vector<1x32x4xf32> to vector<1x32x1xf32>
    %12 = vector.broadcast %11 : vector<1x32x1xf32> to vector<2x32x16xf32>
    %13 = arith.mulf %10, %12 : vector<2x32x16xf32>
    %c0_8 = arith.constant 0 : index
    %c0_9 = arith.constant 0 : index
    %c0_10 = arith.constant 0 : index
    %14 = vector.load %arg2[%c0_8, %c0_9, %c0_10] : memref<2x32x16xf32, #tpu.memory_space<vmem>>, vector<2x32x16xf32>
    %15 = vector.extract_strided_slice %5 {offsets = [0, 0, 3], sizes = [1, 32, 1], strides = [1, 1, 1]} : vector<1x32x4xf32> to vector<1x32x1xf32>
    %16 = vector.broadcast %15 : vector<1x32x1xf32> to vector<2x32x16xf32>
    %17 = arith.mulf %14, %16 : vector<2x32x16xf32>
    %18 = vector.extract_strided_slice %5 {offsets = [0, 0, 2], sizes = [1, 32, 1], strides = [1, 1, 1]} : vector<1x32x4xf32> to vector<1x32x1xf32>
    %19 = vector.broadcast %18 : vector<1x32x1xf32> to vector<2x32x16xf32>
    %20 = arith.addf %17, %19 : vector<2x32x16xf32>
    %21 = arith.addf %13, %20 : vector<2x32x16xf32>
    %c0_11 = arith.constant 0 : index
    %c0_12 = arith.constant 0 : index
    %c0_13 = arith.constant 0 : index
    %22 = vector.load %arg5[%c0_11, %c0_12, %c0_13] : memref<2x32x16xf32, #tpu.memory_space<vmem>>, vector<2x32x16xf32>
    tpu.vector_store %arg5[%c0_11, %c0_12, %c0_13], %21 {strides = array<i32>} : memref<2x32x16xf32, #tpu.memory_space<vmem>>, vector<2x32x16xf32>,
    return
  }
  func.func @transform_0(%arg0: i32) -> (i32, i32, i32) {
    %c0_i32 = arith.constant 0 : i32
    %c0_i32_0 = arith.constant 0 : i32
    %c0_i32_1 = arith.constant 0 : i32
    return %arg0, %c0_i32, %c0_i32_0 : i32, i32, i32
  }
  func.func @transform_1(%arg0: i32) -> (i32, i32, i32) {
    %c0_i32 = arith.constant 0 : i32
    %c0_i32_0 = arith.constant 0 : i32
    %c0_i32_1 = arith.constant 0 : i32
    return %arg0, %c0_i32, %c0_i32_0 : i32, i32, i32
  }
  func.func @transform_2(%arg0: i32) -> (i32, i32) {
    %c0_i32 = arith.constant 0 : i32
    %c0_i32_0 = arith.constant 0 : i32
    %c0_i32_1 = arith.constant 0 : i32
    return %c0_i32, %c0_i32_0 : i32, i32
  }
  func.func @transform_3(%arg0: i32) -> (i32, i32, i32) {
    %c0_i32 = arith.constant 0 : i32
    %c0_i32_0 = arith.constant 0 : i32
    %c0_i32_1 = arith.constant 0 : i32
    %c0_i32_2 = arith.constant 0 : i32
    return %c0_i32, %c0_i32_0, %c0_i32_1 : i32, i32, i32
  }
  func.func @transform_4(%arg0: i32) -> (i32, i32, i32) {
    %c0_i32 = arith.constant 0 : i32
    %c0_i32_0 = arith.constant 0 : i32
    %c0_i32_1 = arith.constant 0 : i32
    return %arg0, %c0_i32, %c0_i32_0 : i32, i32, i32
  }
}

</mosaic_0001>

<llo_original>
// kernel: input_conv_forward.1
$region0: #{input_conv_forward.1}
  #allocation0 [shape = 'u32[]', space=smem, size = 0x4, offset = 0x4, fixed_abs, tag = 'smem constant byte address 0x4 - core index']
  #allocation1 [shape = 'u32[144,128]{1,0:T(1,128)}', space=vmem, size = 0x12000, scoped, tag = 'internal scratch']
  %s0 = inlined_call_operand.vmem [shape: f32[2,4,16], index: 0, kind: input, shape index: {}]
  %s1 = inlined_call_operand.vmem [shape: f32[2,32,16], index: 1, kind: input, shape index: {}]
  %s2 = inlined_call_operand.vmem [shape: f32[32,4], index: 2, kind: input, shape index: {}]
  %s3 = inlined_call_operand.vmem [shape: f32[1,32,4], index: 3, kind: input, shape index: {}]
  %s4 = inlined_call_operand.vmem [shape: f32[2,32,16], index: 4, kind: output, shape index: {}]
  %s5 = sld [smem:[#allocation0]]
  $region26: #{input_conv_forward.1} parent=0
    _
  %s7 = ssub.s32 1, %s5
  %s8 = scalar_select 0, %s7, %s5
  // Predicated region
  $region2: #{input_conv_forward.1} parent=0 // pred_check
    _
  $region3: #{input_conv_forward.1} parent=0 // pred_check_branch
    %10 = sbr.rel (0) target = $region5
  $region4: #{input_conv_forward.1} parent=0 // pred_region
    _
  $region5: #{input_conv_forward.1} parent=0 // pred_fallthru
    _
  // Predicated region
  $region6: #{input_conv_forward.1} parent=0 // pred_check
    _
  $region7: #{input_conv_forward.1} parent=0 // pred_check_branch
    %12 = sbr.rel (0) target = $region9
  $region8: #{input_conv_forward.1} parent=0 // pred_region
    _
  $region9: #{input_conv_forward.1} parent=0 // pred_fallthru
    _
  // Predicated region
  $region10: #{input_conv_forward.1} parent=0 // pred_check
    _
  $region11: #{input_conv_forward.1} parent=0 // pred_check_branch
    %14 = sbr.rel (0) target = $region13
  $region12: #{input_conv_forward.1} parent=0 // pred_region
    _
  $region13: #{input_conv_forward.1} parent=0 // pred_fallthru
    _
  // Predicated region
  $region14: #{input_conv_forward.1} parent=0 // pred_check
    _
  $region15: #{input_conv_forward.1} parent=0 // pred_check_branch
    %16 = sbr.rel (0) target = $region17
  $region16: #{input_conv_forward.1} parent=0 // pred_region
    _
  $region17: #{input_conv_forward.1} parent=0 // pred_fallthru
    _
  %v17 = vld [vmem:[%s2] sm:$0xff]
  %v18 = vld [vmem:[%s2 + $0x8] sm:$0xff]
  %v19 = vld [vmem:[%s2 + $0x10] sm:$0xff]
  %v20 = vld [vmem:[%s2 + $0x18] sm:$0xff]
  %v21 = vld [vmem:[%s0] sm:$0xf]
  %v22 = vld [vmem:[%s0 + $0x4] sm:$0xf]
  %v23 = vld [vmem:[%s3] sm:$0xff]
  %v24 = vld [vmem:[%s3 + $0x8] sm:$0xff]
  %v25 = vld [vmem:[%s3 + $0x10] sm:$0xff]
  %v26 = vld [vmem:[%s3 + $0x18] sm:$0xff]
  %28 = vset.pattern.permute.xlu0 0
  %29 = vperm.xlu0 %28, %v23
  %v30 = vpop.permute.xlu0 %29
  %33 = vset.pattern.permute.xlu0 0
  %34 = vperm.xlu0 %33, %v24
  %v35 = vpop.permute.xlu0 %34
  %38 = vset.pattern.permute.xlu0 0
  %39 = vperm.xlu0 %38, %v25
  %v40 = vpop.permute.xlu0 %39
  %43 = vset.pattern.permute.xlu0 0
  %44 = vperm.xlu0 %43, %v26
  %v45 = vpop.permute.xlu0 %44
  %vm47 = vcmask 31744
  %v49 = vsel %vm47, %v17, 0
  %v52 = vsel %vm47, %v18, 0
  %v55 = vsel %vm47, %v19, 0
  %v58 = vsel %vm47, %v20, 0
  %vm60 = vcmask 1043456
  %v62 = vsel %vm60, %v21, 0
  %64 = vmatprep.subr.mxu0 0.0
  %65 = vmatpush1.msra.mxu0 %v62
  %66 = vmatprep.subr.mxu0 0.0
  %67 = vmatpush1.msra.mxu0 0.0
  %68 = vmatprep.subr.mxu0 0.0
  %69 = vmatpush1.msra.mxu0 0.0
  %70 = vmatprep.subr.mxu0 0.0
  %71 = vmatpush1.msra.mxu0 0.0
  %72 = vmatprep.subr.mxu0 0.0
  %73 = vmatpush1.msra.mxu0 0.0
  %74 = vmatprep.subr.mxu0 0.0
  %75 = vmatpush1.msra.mxu0 0.0
  %76 = vmatprep.subr.mxu0 0.0
  %77 = vmatpush1.msra.mxu0 0.0
  %78 = vmatprep.subr.mxu0 0.0
  %79 = vmatpush1.msra.mxu0 0.0
  %80 = vmatprep.subr.mxu0 0.0
  %81 = vmatpush1.msra.mxu0 0.0
  %82 = vmatprep.subr.mxu0 0.0
  %83 = vmatpush1.msra.mxu0 0.0
  %84 = vmatprep.subr.mxu0 0.0
  %85 = vmatpush1.msra.mxu0 0.0
  %86 = vmatprep.subr.mxu0 0.0
  %87 = vmatpush1.msra.mxu0 0.0
  %88 = vmatprep.subr.mxu0 0.0
  %89 = vmatpush1.msra.mxu0 0.0
  %90 = vmatprep.subr.mxu0 0.0
  %91 = vmatpush1.msra.mxu0 0.0
  %92 = vmatprep.subr.mxu0 0.0
  %93 = vmatpush1.msra.mxu0 0.0
  %94 = vmatprep.subr.mxu0 0.0
  %95 = vmatpush1.msra.mxu0 0.0
  %96 = vmatprep.subr.mxu0 0.0
  %97 = vmatpush1.msra.mxu0 0.0
  %98 = vmatprep.subr.mxu0 0.0
  %99 = vmatpush1.msra.mxu0 0.0
  %100 = vmatprep.subr.mxu0 0.0
  %101 = vmatpush1.msra.mxu0 0.0
  %102 = vmatprep.subr.mxu0 0.0
  %103 = vmatpush1.msra.mxu0 0.0
  %104 = vmatprep.subr.mxu0 0.0
  %105 = vmatpush1.msra.mxu0 0.0
  %106 = vmatprep.subr.mxu0 0.0
  %107 = vmatpush1.msra.mxu0 0.0
  %108 = vmatprep.subr.mxu0 0.0
  %109 = vmatpush1.msra.mxu0 0.0
  %110 = vmatprep.subr.mxu0 0.0
  %111 = vmatpush1.msra.mxu0 0.0
  %112 = vmatprep.subr.mxu0 0.0
  %113 = vmatpush1.msra.mxu0 0.0
  %114 = vmatprep.subr.mxu0 0.0
  %115 = vmatpush1.msra.mxu0 0.0
  %116 = vmatprep.subr.mxu0 0.0
  %117 = vmatpush1.msra.mxu0 0.0
  %118 = vmatprep.subr.mxu0 0.0
  %119 = vmatpush1.msra.mxu0 0.0
  %120 = vmatprep.subr.mxu0 0.0
  %121 = vmatpush1.msra.mxu0 0.0
  %122 = vmatprep.subr.mxu0 0.0
  %123 = vmatpush1.msra.mxu0 0.0
  %124 = vmatprep.subr.mxu0 0.0
  %125 = vmatpush1.msra.mxu0 0.0
  %126 = vmatprep.subr.mxu0 0.0
  %127 = vmatpush1.msra.mxu0 0.0
  %128 = vmatprep.mubr.f32.mxu0 0.0
  %129 = vmatmul.mubr.f32.gmra.mrb[0].mxu0 %v49
  %v130 = vpop.f32.mrb[0].mxu0
  %v131 = vadd.f32 %v30, %v130
  %v132 = vpop.f32.mrb[0].mxu0
  %133 = vmatprep.mubr.f32.mxu0 0.0
  %134 = vmatmul.mubr.f32.gmra.mrb[0].mxu0 %v52
  %v135 = vpop.f32.mrb[0].mxu0
  %v136 = vadd.f32 %v35, %v135
  %v137 = vpop.f32.mrb[0].mxu0
  %138 = vmatprep.mubr.f32.mxu0 0.0
  %139 = vmatmul.mubr.f32.gmra.mrb[0].mxu0 %v55
  %v140 = vpop.f32.mrb[0].mxu0
  %v141 = vadd.f32 %v40, %v140
  %v142 = vpop.f32.mrb[0].mxu0
  %143 = vmatprep.mubr.f32.mxu0 0.0
  %144 = vmatmul.mubr.f32.gmra.mrb[0].mxu0 %v58
  %v145 = vpop.f32.mrb[0].mxu0
  %v146 = vadd.f32 %v45, %v145
  %v147 = vpop.f32.mrb[0].mxu0
  %148 = vdwg.mxu0
  %v150 = vsel %vm60, %v22, 0
  %152 = vmatprep.subr.mxu0 0.0
  %153 = vmatpush1.msra.mxu0 %v150
  %154 = vmatprep.subr.mxu0 0.0
  %155 = vmatpush1.msra.mxu0 0.0
  %156 = vmatprep.subr.mxu0 0.0
  %157 = vmatpush1.msra.mxu0 0.0
  %158 = vmatprep.subr.mxu0 0.0
  %159 = vmatpush1.msra.mxu0 0.0
  %160 = vmatprep.subr.mxu0 0.0
  %161 = vmatpush1.msra.mxu0 0.0
  %162 = vmatprep.subr.mxu0 0.0
  %163 = vmatpush1.msra.mxu0 0.0
  %164 = vmatprep.subr.mxu0 0.0
  %165 = vmatpush1.msra.mxu0 0.0
  %166 = vmatprep.subr.mxu0 0.0
  %167 = vmatpush1.msra.mxu0 0.0
  %168 = vmatprep.subr.mxu0 0.0
  %169 = vmatpush1.msra.mxu0 0.0
  %170 = vmatprep.subr.mxu0 0.0
  %171 = vmatpush1.msra.mxu0 0.0
  %172 = vmatprep.subr.mxu0 0.0
  %173 = vmatpush1.msra.mxu0 0.0
  %174 = vmatprep.subr.mxu0 0.0
  %175 = vmatpush1.msra.mxu0 0.0
  %176 = vmatprep.subr.mxu0 0.0
  %177 = vmatpush1.msra.mxu0 0.0
  %178 = vmatprep.subr.mxu0 0.0
  %179 = vmatpush1.msra.mxu0 0.0
  %180 = vmatprep.subr.mxu0 0.0
  %181 = vmatpush1.msra.mxu0 0.0
  %182 = vmatprep.subr.mxu0 0.0
  %183 = vmatpush1.msra.mxu0 0.0
  %184 = vmatprep.subr.mxu0 0.0
  %185 = vmatpush1.msra.mxu0 0.0
  %186 = vmatprep.subr.mxu0 0.0
  %187 = vmatpush1.msra.mxu0 0.0
  %188 = vmatprep.subr.mxu0 0.0
  %189 = vmatpush1.msra.mxu0 0.0
  %190 = vmatprep.subr.mxu0 0.0
  %191 = vmatpush1.msra.mxu0 0.0
  %192 = vmatprep.subr.mxu0 0.0
  %193 = vmatpush1.msra.mxu0 0.0
  %194 = vmatprep.subr.mxu0 0.0
  %195 = vmatpush1.msra.mxu0 0.0
  %196 = vmatprep.subr.mxu0 0.0
  %197 = vmatpush1.msra.mxu0 0.0
  %198 = vmatprep.subr.mxu0 0.0
  %199 = vmatpush1.msra.mxu0 0.0
  %200 = vmatprep.subr.mxu0 0.0
  %201 = vmatpush1.msra.mxu0 0.0
  %202 = vmatprep.subr.mxu0 0.0
  %203 = vmatpush1.msra.mxu0 0.0
  %204 = vmatprep.subr.mxu0 0.0
  %205 = vmatpush1.msra.mxu0 0.0
  %206 = vmatprep.subr.mxu0 0.0
  %207 = vmatpush1.msra.mxu0 0.0
  %208 = vmatprep.subr.mxu0 0.0
  %209 = vmatpush1.msra.mxu0 0.0
  %210 = vmatprep.subr.mxu0 0.0
  %211 = vmatpush1.msra.mxu0 0.0
  %212 = vmatprep.subr.mxu0 0.0
  %213 = vmatpush1.msra.mxu0 0.0
  %214 = vmatprep.subr.mxu0 0.0
  %215 = vmatpush1.msra.mxu0 0.0
  %216 = vmatprep.mubr.f32.mxu0 0.0
  %217 = vmatmul.mubr.f32.gmra.mrb[0].mxu0 %v49
  %v218 = vpop.f32.mrb[0].mxu0
  %v219 = vadd.f32 %v30, %v218
  %v220 = vpop.f32.mrb[0].mxu0
  %221 = vmatprep.mubr.f32.mxu0 0.0
  %222 = vmatmul.mubr.f32.gmra.mrb[0].mxu0 %v52
  %v223 = vpop.f32.mrb[0].mxu0
  %v224 = vadd.f32 %v35, %v223
  %v225 = vpop.f32.mrb[0].mxu0
  %226 = vmatprep.mubr.f32.mxu0 0.0
  %227 = vmatmul.mubr.f32.gmra.mrb[0].mxu0 %v55
  %v228 = vpop.f32.mrb[0].mxu0
  %v229 = vadd.f32 %v40, %v228
  %v230 = vpop.f32.mrb[0].mxu0
  %231 = vmatprep.mubr.f32.mxu0 0.0
  %232 = vmatmul.mubr.f32.gmra.mrb[0].mxu0 %v58
  %v233 = vpop.f32.mrb[0].mxu0
  %v234 = vadd.f32 %v45, %v233
  %v235 = vpop.f32.mrb[0].mxu0
  %236 = vdwg.mxu0
  %v237 = vmax.f32 %v131, 0.0
  %v238 = vmax.f32 %v136, 0.0
  %v239 = vmax.f32 %v141, 0.0
  %v240 = vmax.f32 %v146, 0.0
  %v241 = vmax.f32 %v219, 0.0
  %v242 = vmax.f32 %v224, 0.0
  %v243 = vmax.f32 %v229, 0.0
  %v244 = vmax.f32 %v234, 0.0
  %245 = vset.pattern.permute.xlu0 1
  %246 = vperm.xlu0 %245, %v23
  %v247 = vpop.permute.xlu0 %246
  %249 = vset.pattern.permute.xlu0 1
  %250 = vperm.xlu0 %249, %v24
  %v251 = vpop.permute.xlu0 %250
  %253 = vset.pattern.permute.xlu0 1
  %254 = vperm.xlu0 %253, %v25
  %v255 = vpop.permute.xlu0 %254
  %257 = vset.pattern.permute.xlu0 1
  %258 = vperm.xlu0 %257, %v26
  %v259 = vpop.permute.xlu0 %258
  %v261 = vmul.f32 %v237, %v247
  %v262 = vmul.f32 %v238, %v251
  %v263 = vmul.f32 %v239, %v255
  %v264 = vmul.f32 %v240, %v259
  %v265 = vmul.f32 %v241, %v247
  %v266 = vmul.f32 %v242, %v251
  %v267 = vmul.f32 %v243, %v255
  %v268 = vmul.f32 %v244, %v259
  %v269 = vld [vmem:[%s1] sm:$0xff]
  %v270 = vld [vmem:[%s1 + $0x8] sm:$0xff]
  %v271 = vld [vmem:[%s1 + $0x10] sm:$0xff]
  %v272 = vld [vmem:[%s1 + $0x18] sm:$0xff]
  %v273 = vld [vmem:[%s1 + $0x20] sm:$0xff]
  %v274 = vld [vmem:[%s1 + $0x28] sm:$0xff]
  %v275 = vld [vmem:[%s1 + $0x30] sm:$0xff]
  %v276 = vld [vmem:[%s1 + $0x38] sm:$0xff]
  %277 = vset.pattern.permute.xlu0 3
  %278 = vperm.xlu0 %277, %v23
  %v279 = vpop.permute.xlu0 %278
  %281 = vset.pattern.permute.xlu0 3
  %282 = vperm.xlu0 %281, %v24
  %v283 = vpop.permute.xlu0 %282
  %285 = vset.pattern.permute.xlu0 3
  %286 = vperm.xlu0 %285, %v25
  %v287 = vpop.permute.xlu0 %286
  %289 = vset.pattern.permute.xlu0 3
  %290 = vperm.xlu0 %289, %v26
  %v291 = vpop.permute.xlu0 %290
  %v293 = vmul.f32 %v269, %v279
  %v294 = vmul.f32 %v270, %v283
  %v295 = vmul.f32 %v271, %v287
  %v296 = vmul.f32 %v272, %v291
  %v297 = vmul.f32 %v273, %v279
  %v298 = vmul.f32 %v274, %v283
  %v299 = vmul.f32 %v275, %v287
  %v300 = vmul.f32 %v276, %v291
  %301 = vset.pattern.permute.xlu0 2
  %302 = vperm.xlu0 %301, %v23
  %v303 = vpop.permute.xlu0 %302
  %305 = vset.pattern.permute.xlu0 2
  %306 = vperm.xlu0 %305, %v24
  %v307 = vpop.permute.xlu0 %306
  %309 = vset.pattern.permute.xlu0 2
  %310 = vperm.xlu0 %309, %v25
  %v311 = vpop.permute.xlu0 %310
  %313 = vset.pattern.permute.xlu0 2
  %314 = vperm.xlu0 %313, %v26
  %v315 = vpop.permute.xlu0 %314
  %v317 = vadd.f32 %v293, %v303
  %v318 = vadd.f32 %v294, %v307
  %v319 = vadd.f32 %v295, %v311
  %v320 = vadd.f32 %v296, %v315
  %v321 = vadd.f32 %v297, %v303
  %v322 = vadd.f32 %v298, %v307
  %v323 = vadd.f32 %v299, %v311
  %v324 = vadd.f32 %v300, %v315
  %v325 = vadd.f32 %v261, %v317
  %v326 = vadd.f32 %v262, %v318
  %v327 = vadd.f32 %v263, %v319
  %v328 = vadd.f32 %v264, %v320
  %v329 = vadd.f32 %v265, %v321
  %v330 = vadd.f32 %v266, %v322
  %v331 = vadd.f32 %v267, %v323
  %v332 = vadd.f32 %v268, %v324
  %vm333 = vcmask 130048
  %334 = vst.msk [vmem:[%s4] sm:$0xff] %vm333, %v325
  %335 = vst.msk [vmem:[%s4 + $0x8] sm:$0xff] %vm333, %v326
  %336 = vst.msk [vmem:[%s4 + $0x10] sm:$0xff] %vm333, %v327
  %337 = vst.msk [vmem:[%s4 + $0x18] sm:$0xff] %vm333, %v328
  %338 = vst.msk [vmem:[%s4 + $0x20] sm:$0xff] %vm333, %v329
  %339 = vst.msk [vmem:[%s4 + $0x28] sm:$0xff] %vm333, %v330
  %340 = vst.msk [vmem:[%s4 + $0x30] sm:$0xff] %vm333, %v331
  %341 = vst.msk [vmem:[%s4 + $0x38] sm:$0xff] %vm333, %v332
  // Predicated region
  $region18: #{input_conv_forward.1} parent=0 // pred_check
    _
  $region19: #{input_conv_forward.1} parent=0 // pred_check_branch
    %343 = sbr.rel (0) target = $region21
  $region20: #{input_conv_forward.1} parent=0 // pred_region
    _
  $region21: #{input_conv_forward.1} parent=0 // pred_fallthru
    _
  // Predicated region
  $region22: #{input_conv_forward.1} parent=0 // pred_check
    _
  $region23: #{input_conv_forward.1} parent=0 // pred_check_branch
    %345 = sbr.rel (0) target = $region25
  $region24: #{input_conv_forward.1} parent=0 // pred_region
    _
  $region25: #{input_conv_forward.1} parent=0 // pred_fallthru
    _

</llo_original>
